<compile_context>
chip_gen: v5e
topology: v5e:2x2
jax: 0.10.0
libtpu: 0.0.40
codegen_flags: <defaults>
</compile_context>

<pallas_src>
import jax
import jax.numpy as jnp
from jax.experimental import pallas as pl
from jax.experimental.pallas import tpu as pltpu

_LANE = 128          # TPU vreg lane width
_DEFAULT_TILE_B = 128
_NEG_BIG = -1e30     # bias for padded output lanes -> exp underflows to 0


def _round_up(n, m):
    return ((n + m - 1) // m) * m


def _make_mlp_kernel(n_layers):
    """Build a fused MLP kernel for `n_layers` Linear layers (ReLU between
    all but the last, softmax after the last)."""

    def kernel(*refs):
        x_ref = refs[0]
        o_ref = refs[-1]
        wb_refs = refs[1:-1]          # w1, b1, w2, b2, ..., wN, bN

        h = x_ref[...]
        for li in range(n_layers):
            w_ref = wb_refs[2 * li]
            b_ref = wb_refs[2 * li + 1]
            # MXU matmul with f32 accumulation, then VPU bias add.
            h = jnp.dot(h, w_ref[...], preferred_element_type=jnp.float32)
            h = h + b_ref[...]
            if li < n_layers - 1:
                h = jnp.maximum(h, 0.0)          # ReLU (VPU)

        # ---- numerically stable softmax over the (lane-padded) last dim ----
        m = jnp.max(h, axis=-1, keepdims=True)
        e = jnp.exp(h - m)                        # EUP
        denom = jnp.sum(e, axis=-1, keepdims=True)
        inv = pl.reciprocal(denom, approx=False)  # EUP slot, exact
        o_ref[...] = (e * inv).astype(o_ref.dtype)

    return kernel


def mlp_forward(x, params, *, tile_b=_DEFAULT_TILE_B):
    """x: (B, input_dim) f32.
    params: dict {"w1": (in, h0), "b1": (1, h0), ..., "wN": (h_last, out),
    "bN": (1, out)} — weights already stored transposed vs torch."""
    n_layers = len(params) // 2
    ws = [params[f"w{i+1}"] for i in range(n_layers)]
    bs = [params[f"b{i+1}"] for i in range(n_layers)]

    B, in_dim = x.shape
    out_dim = ws[-1].shape[1]

    # ---- lane-dense output: pad out_dim up to a multiple of 128 ----
    out_pad = _round_up(max(out_dim, _LANE), _LANE)
    ws[-1] = jnp.pad(ws[-1], ((0, 0), (0, out_pad - out_dim)))
    bs[-1] = jnp.pad(bs[-1], ((0, 0), (0, out_pad - out_dim)),
                     constant_values=_NEG_BIG)

    # ---- batch tiling: pad B up to a multiple of the tile ----
    tile_b = min(tile_b, _round_up(B, 8))      # keep tiny batches cheap
    b_pad = _round_up(B, tile_b)
    xp = jnp.pad(x, ((0, b_pad - B), (0, 0)))  # zero rows -> finite softmax

    grid = (b_pad // tile_b,)

    def resident(arr):
        # Full-array block, same block index every grid step -> stays in VMEM.
        return pl.BlockSpec(arr.shape, lambda i: (0, 0))

    in_specs = [pl.BlockSpec((tile_b, in_dim), lambda i: (i, 0))]   # x: tiled batch
    wb_args = []
    for w, b in zip(ws, bs):
        in_specs += [resident(w), resident(b)]
        wb_args += [w, b]

    out = pl.pallas_call(
        _make_mlp_kernel(n_layers),
        out_shape=jax.ShapeDtypeStruct((b_pad, out_pad), jnp.float32),
        grid=grid,
        in_specs=in_specs,
        out_specs=pl.BlockSpec((tile_b, out_pad), lambda i: (i, 0)),
        compiler_params=pltpu.CompilerParams(
            dimension_semantics=("parallel",)),   # shard batch across TCs (v7x)
    )(xp, *wb_args)

    return out[:B, :out_dim]


def init_params(key, input_dim, hidden_dims, output_dim):
    """Deterministic PyTorch-style (uniform +/- 1/sqrt(fan_in)) init.
    Weights are stored as (in, out) — i.e. already transposed vs torch."""
    dims = [input_dim] + list(hidden_dims) + [output_dim]
    params = {}
    for i in range(len(dims) - 1):
        fan_in, fan_out = dims[i], dims[i + 1]
        key, kw, kb = jax.random.split(key, 3)
        bound = 1.0 / jnp.sqrt(jnp.float32(fan_in))
        params[f"w{i+1}"] = jax.random.uniform(
            kw, (fan_in, fan_out), jnp.float32, -bound, bound)
        params[f"b{i+1}"] = jax.random.uniform(
            kb, (1, fan_out), jnp.float32, -bound, bound)
    return params


def _reference(x, params):
    n_layers = len(params) // 2
    h = x
    for i in range(n_layers):
        h = h @ params[f"w{i+1}"] + params[f"b{i+1}"]
        if i < n_layers - 1:
            h = jnp.maximum(h, 0.0)
    return jax.nn.softmax(h, axis=-1)


if __name__ == "__main__":
    # Net(input_dim=16, hidden_dims=[32, 32], output_dim=8); B=256 so the
    # batch grid (2 tiles of 128 rows) actually pipelines / splits across TCs.
    B, input_dim, hidden_dims, output_dim = 256, 16, [32, 32], 8

    key = jax.random.PRNGKey(0)
    key, kx = jax.random.split(key)
    x = jax.random.normal(kx, (B, input_dim), jnp.float32)

    params = init_params(key, input_dim, hidden_dims, output_dim)

    out = mlp_forward(x, params)
    out = jax.block_until_ready(out)

    ref = _reference(x, params)
    assert out.shape == (B, output_dim)
    assert jnp.allclose(out, ref, atol=2e-5, rtol=1e-4)
    # rows of a softmax must sum to 1
    assert jnp.allclose(jnp.sum(out, axis=-1), jnp.ones((B,)), atol=1e-5)

    print("KERNEL_OK")
</pallas_src>

<mosaic_0001>
module attributes {stable_mosaic.version = 11 : i64} {
  func.func @kernel(%arg0: i32, %arg1: memref<128x16xf32, #tpu.memory_space<vmem>>, %arg2: memref<16x32xf32, #tpu.memory_space<vmem>>, %arg3: memref<1x32xf32, #tpu.memory_space<vmem>>, %arg4: memref<32x32xf32, #tpu.memory_space<vmem>>, %arg5: memref<1x32xf32, #tpu.memory_space<vmem>>, %arg6: memref<32x128xf32, #tpu.memory_space<vmem>>, %arg7: memref<1x128xf32, #tpu.memory_space<vmem>>, %arg8: memref<128x128xf32, #tpu.memory_space<vmem>>) attributes {dimension_semantics = [#tpu.dimension_semantics<parallel>], iteration_bounds = array<i64: 2>, scalar_prefetch = 0 : i64, scratch_operands = 0 : i64, tpu.core_type = #tpu.core_type<tc>, window_params = [{transform_indices = @transform_0, window_bounds = array<i64: 128, 16>}, {pipeline_mode = #tpu.pipeline_mode<synchronous>, transform_indices = @transform_1, window_bounds = array<i64: 16, 32>}, {pipeline_mode = #tpu.pipeline_mode<synchronous>, transform_indices = @transform_2, window_bounds = array<i64: 1, 32>}, {pipeline_mode = #tpu.pipeline_mode<synchronous>, transform_indices = @transform_3, window_bounds = array<i64: 32, 32>}, {pipeline_mode = #tpu.pipeline_mode<synchronous>, transform_indices = @transform_4, window_bounds = array<i64: 1, 32>}, {pipeline_mode = #tpu.pipeline_mode<synchronous>, transform_indices = @transform_5, window_bounds = array<i64: 32, 128>}, {pipeline_mode = #tpu.pipeline_mode<synchronous>, transform_indices = @transform_6, window_bounds = array<i64: 1, 128>}, {transform_indices = @transform_7, window_bounds = array<i64: 128, 128>}]} {
    %c0 = arith.constant 0 : index
    %c0_0 = arith.constant 0 : index
    %0 = vector.load %arg1[%c0, %c0_0] : memref<128x16xf32, #tpu.memory_space<vmem>>, vector<128x16xf32>
    %c0_1 = arith.constant 0 : index
    %c0_2 = arith.constant 0 : index
    %1 = vector.load %arg2[%c0_1, %c0_2] : memref<16x32xf32, #tpu.memory_space<vmem>>, vector<16x32xf32>
    %cst = arith.constant dense<0.000000e+00> : vector<128x32xf32>
    %2 = tpu.matmul %0, %1, %cst {dimension_numbers = #tpu.dot_dimension_numbers<[1], [0], [0], [1], [0, 0, 1, 1], [], []>} : vector<128x16xf32>, vector<16x32xf32>, vector<128x32xf32> -> vector<128x32xf32>
    %c0_3 = arith.constant 0 : index
    %c0_4 = arith.constant 0 : index
    %3 = vector.load %arg3[%c0_3, %c0_4] : memref<1x32xf32, #tpu.memory_space<vmem>>, vector<1x32xf32>
    %4 = vector.broadcast %3 : vector<1x32xf32> to vector<128x32xf32>
    %5 = arith.addf %2, %4 : vector<128x32xf32>
    %cst_5 = arith.constant 0.000000e+00 : f32
    %6 = vector.broadcast %cst_5 : f32 to vector<128x32xf32>
    %7 = arith.maximumf %5, %6 : vector<128x32xf32>
    %c0_6 = arith.constant 0 : index
    %c0_7 = arith.constant 0 : index
    %8 = vector.load %arg4[%c0_6, %c0_7] : memref<32x32xf32, #tpu.memory_space<vmem>>, vector<32x32xf32>
    %cst_8 = arith.constant dense<0.000000e+00> : vector<128x32xf32>
    %9 = tpu.matmul %7, %8, %cst_8 {dimension_numbers = #tpu.dot_dimension_numbers<[1], [0], [0], [1], [0, 0, 1, 1], [], []>} : vector<128x32xf32>, vector<32x32xf32>, vector<128x32xf32> -> vector<128x32xf32>
    %c0_9 = arith.constant 0 : index
    %c0_10 = arith.constant 0 : index
    %10 = vector.load %arg5[%c0_9, %c0_10] : memref<1x32xf32, #tpu.memory_space<vmem>>, vector<1x32xf32>
    %11 = vector.broadcast %10 : vector<1x32xf32> to vector<128x32xf32>
    %12 = arith.addf %9, %11 : vector<128x32xf32>
    %cst_11 = arith.constant 0.000000e+00 : f32
    %13 = vector.broadcast %cst_11 : f32 to vector<128x32xf32>
    %14 = arith.maximumf %12, %13 : vector<128x32xf32>
    %c0_12 = arith.constant 0 : index
    %c0_13 = arith.constant 0 : index
    %15 = vector.load %arg6[%c0_12, %c0_13] : memref<32x128xf32, #tpu.memory_space<vmem>>, vector<32x128xf32>
    %cst_14 = arith.constant dense<0.000000e+00> : vector<128x128xf32>
    %16 = tpu.matmul %14, %15, %cst_14 {dimension_numbers = #tpu.dot_dimension_numbers<[1], [0], [0], [1], [0, 0, 1, 1], [], []>} : vector<128x32xf32>, vector<32x128xf32>, vector<128x128xf32> -> vector<128x128xf32>
    %c0_15 = arith.constant 0 : index
    %c0_16 = arith.constant 0 : index
    %17 = vector.load %arg7[%c0_15, %c0_16] : memref<1x128xf32, #tpu.memory_space<vmem>>, vector<1x128xf32>
    %18 = vector.broadcast %17 : vector<1x128xf32> to vector<128x128xf32>
    %19 = arith.addf %16, %18 : vector<128x128xf32>
    %cst_17 = arith.constant dense<0xFF800000> : vector<128xf32>
    %20 = vector.multi_reduction <maximumf>, %19, %cst_17 [1] : vector<128x128xf32> to vector<128xf32>
    %21 = vector.shape_cast %20 : vector<128xf32> to vector<128x1xf32>
    %22 = vector.broadcast %21 : vector<128x1xf32> to vector<128x128xf32>
    %23 = arith.subf %19, %22 : vector<128x128xf32>
    %24 = math.exp %23 : vector<128x128xf32>
    %cst_18 = arith.constant dense<0.000000e+00> : vector<128xf32>
    %25 = vector.multi_reduction <add>, %24, %cst_18 [1] : vector<128x128xf32> to vector<128xf32>
    %26 = vector.shape_cast %25 : vector<128xf32> to vector<128x1xf32>
    %27 = tpu.reciprocal %26 : vector<128x1xf32> -> vector<128x1xf32>
    %28 = vector.broadcast %27 : vector<128x1xf32> to vector<128x128xf32>
    %29 = arith.mulf %24, %28 : vector<128x128xf32>
    %c0_19 = arith.constant 0 : index
    %c0_20 = arith.constant 0 : index
    %30 = vector.load %arg8[%c0_19, %c0_20] : memref<128x128xf32, #tpu.memory_space<vmem>>, vector<128x128xf32>
    tpu.vector_store %arg8[%c0_19, %c0_20], %29 {strides = array<i32>} : memref<128x128xf32, #tpu.memory_space<vmem>>, vector<128x128xf32>,
    return
  }
  func.func @transform_0(%arg0: i32) -> (i32, i32) {
    %c0_i32 = arith.constant 0 : i32
    %c0_i32_0 = arith.constant 0 : i32
    return %arg0, %c0_i32 : i32, i32
  }
  func.func @transform_1(%arg0: i32) -> (i32, i32) {
    %c0_i32 = arith.constant 0 : i32
    %c0_i32_0 = arith.constant 0 : i32
    %c0_i32_1 = arith.constant 0 : i32
    return %c0_i32, %c0_i32_0 : i32, i32
  }
  func.func @transform_2(%arg0: i32) -> (i32, i32) {
    %c0_i32 = arith.constant 0 : i32
    %c0_i32_0 = arith.constant 0 : i32
    %c0_i32_1 = arith.constant 0 : i32
    return %c0_i32, %c0_i32_0 : i32, i32
  }
  func.func @transform_3(%arg0: i32) -> (i32, i32) {
    %c0_i32 = arith.constant 0 : i32
    %c0_i32_0 = arith.constant 0 : i32
    %c0_i32_1 = arith.constant 0 : i32
    return %c0_i32, %c0_i32_0 : i32, i32
  }
  func.func @transform_4(%arg0: i32) -> (i32, i32) {
    %c0_i32 = arith.constant 0 : i32
    %c0_i32_0 = arith.constant 0 : i32
    %c0_i32_1 = arith.constant 0 : i32
    return %c0_i32, %c0_i32_0 : i32, i32
  }
  func.func @transform_5(%arg0: i32) -> (i32, i32) {
    %c0_i32 = arith.constant 0 : i32
    %c0_i32_0 = arith.constant 0 : i32
    %c0_i32_1 = arith.constant 0 : i32
    return %c0_i32, %c0_i32_0 : i32, i32
  }
  func.func @transform_6(%arg0: i32) -> (i32, i32) {
    %c0_i32 = arith.constant 0 : i32
    %c0_i32_0 = arith.constant 0 : i32
    %c0_i32_1 = arith.constant 0 : i32
    return %c0_i32, %c0_i32_0 : i32, i32
  }
  func.func @transform_7(%arg0: i32) -> (i32, i32) {
    %c0_i32 = arith.constant 0 : i32
    %c0_i32_0 = arith.constant 0 : i32
    return %arg0, %c0_i32 : i32, i32
  }
}

</mosaic_0001>

<llo_original>
// kernel: tpu_custom_call.1
$region0: #{tpu_custom_call.1}
  #allocation0 [shape = 'u32[]', space=smem, size = 0x4, offset = 0x4, fixed_abs, tag = 'smem constant byte address 0x4 - core index']
  #allocation1 [shape = 'u32[72,128]{1,0:T(1,128)}', space=vmem, size = 0x9000, scoped, tag = 'internal scratch']
  %s0 = inlined_call_operand.vmem [shape: f32[256,16], index: 0, kind: input, shape index: {}]
  %s1 = inlined_call_operand.vmem [shape: f32[16,32], index: 1, kind: input, shape index: {}]
  %s2 = inlined_call_operand.vmem [shape: f32[1,32], index: 2, kind: input, shape index: {}]
  %s3 = inlined_call_operand.vmem [shape: f32[32,32], index: 3, kind: input, shape index: {}]
  %s4 = inlined_call_operand.vmem [shape: f32[1,32], index: 4, kind: input, shape index: {}]
  %s5 = inlined_call_operand.vmem [shape: f32[32,128], index: 5, kind: input, shape index: {}]
  %s6 = inlined_call_operand.vmem [shape: f32[1,128], index: 6, kind: input, shape index: {}]
  %s7 = inlined_call_operand.hbm [shape: f32[256,128], index: 7, kind: output, shape index: {}]
  %s8 = sld [smem:[#allocation0]]
  $region61: #{tpu_custom_call.1} parent=0
    _
  %s10 = ssub.s32 1, %s8
  %s11 = scalar_select 0, %s10, %s8
  $region1: #{tpu_custom_call.1} parent=0
    #allocation2 [shape = 'u8[131072]{0}', space=vmem, size = 0x20000, scoped, tag = 'output window, operand 0']
    #allocation3 [shape = 's32[2]{0}', space=sflag, size = 0x8, scoped, tag = 'scoped memory for tpu_custom_call.1']
    %12 = vsyncpa [#allocation3], 0
    %s13 = scalar_lea.sflag [#allocation3], 1
    %14 = vsyncpa %s13, 0
    loop: start=0, step=1, limit=4
    $region2: #{tpu_custom_call.1} parent=1 // loop_pre_header
      _
    $region3: #{tpu_custom_call.1} parent=1 // loop_header
      %s16 = sphi 0, %s20
      %p17 = scmp.ge.s32.totalorder %s16, 4
      %s26 = sphi 0, %s28
      %s29 = sphi 0, %s26
      %s30 = sphi 0, %s29
      %s46 = sphi 0, %s30
      %s50 = sphi 0, %s50
      %s52 = sphi 0, %s50
      %s53 = sphi 0, %s52
      %s67 = sphi 0, %s53
      %s71 = sphi 0, %s71
      %s73 = sphi 0, %s71
      %s74 = sphi 0, %s73
      %s88 = sphi 0, %s74
      %s92 = sphi 0, %s92
      %s94 = sphi 0, %s92
      %s95 = sphi 0, %s94
      %s109 = sphi 0, %s95
      %s113 = sphi 0, %s113
      %s115 = sphi 0, %s113
      %s116 = sphi 0, %s115
      %s130 = sphi 0, %s116
      %s134 = sphi 0, %s134
      %s136 = sphi 0, %s134
      %s137 = sphi 0, %s136
      %s151 = sphi 0, %s137
      %s155 = sphi 0, %s155
      %s157 = sphi 0, %s155
      %s158 = sphi 0, %s157
      %s172 = sphi 0, %s158
      %s178 = sphi 0, %s180
      %s181 = sphi 0, %s178
      %s182 = sphi 0, %s181
      %s198 = sphi 0, %s182
    $region4: #{tpu_custom_call.1} parent=1 // loop_header_branch
      %19 = sbr.rel (%p17) target = $region8
    $region5: #{tpu_custom_call.1} parent=1 // loop_body
      %s21 = ssub.s32 %s16, 1
      %s22 = ssub.s32 %s16, 2
      %s23 = sadd.s32 %s16, 1
      %s24 = ssub.s32 %s16, %s23
      %p25 = scmp.eq.s32.totalorder %s24, 0
      %s27 = sadd.s32 %s26, 1
      %s28 = scalar_select %p25, %s26, %s27
      %p31 = pneg %p25
      %p32 = scmp.eq.s32.totalorder %s16, 1
      %p33 = por %p31, %p32
      %p34 = scmp.ne.s32.totalorder %s26, %s29
      %p35 = scmp.eq.s32.totalorder %s16, 0
      %p36 = por %p34, %p35
      %p37 = scmp.ne.s32.totalorder %s26, %s29
      %p38 = scmp.eq.s32.totalorder %s21, 1
      %p39 = por %p37, %p38
      %p40 = scmp.ne.s32.totalorder %s29, %s30
      %p41 = scmp.eq.s32.totalorder %s21, 0
      %p42 = por %p40, %p41
      %p43 = scmp.ne.s32.totalorder %s29, %s30
      %p44 = scmp.eq.s32.totalorder %s22, 1
      %p45 = por %p43, %p44
      %p47 = scmp.ne.s32.totalorder %s30, %s46
      %p48 = scmp.eq.s32.totalorder %s22, 0
      %p49 = por %p47, %p48
      %s51 = sadd.s32 %s50, 1
      %p54 = scmp.eq.s32.totalorder %s16, 1
      %p55 = scmp.ne.s32.totalorder %s50, %s52
      %p56 = scmp.eq.s32.totalorder %s16, 0
      %p57 = por %p55, %p56
      %p58 = scmp.ne.s32.totalorder %s50, %s52
      %p59 = scmp.eq.s32.totalorder %s21, 1
      %p60 = por %p58, %p59
      %p61 = scmp.ne.s32.totalorder %s52, %s53
      %p62 = scmp.eq.s32.totalorder %s21, 0
      %p63 = por %p61, %p62
      %p64 = scmp.ne.s32.totalorder %s52, %s53
      %p65 = scmp.eq.s32.totalorder %s22, 1
      %p66 = por %p64, %p65
      %p68 = scmp.ne.s32.totalorder %s53, %s67
      %p69 = scmp.eq.s32.totalorder %s22, 0
      %p70 = por %p68, %p69
      %s72 = sadd.s32 %s71, 1
      %p75 = scmp.eq.s32.totalorder %s16, 1
      %p76 = scmp.ne.s32.totalorder %s71, %s73
      %p77 = scmp.eq.s32.totalorder %s16, 0
      %p78 = por %p76, %p77
      %p79 = scmp.ne.s32.totalorder %s71, %s73
      %p80 = scmp.eq.s32.totalorder %s21, 1
      %p81 = por %p79, %p80
      %p82 = scmp.ne.s32.totalorder %s73, %s74
      %p83 = scmp.eq.s32.totalorder %s21, 0
      %p84 = por %p82, %p83
      %p85 = scmp.ne.s32.totalorder %s73, %s74
      %p86 = scmp.eq.s32.totalorder %s22, 1
      %p87 = por %p85, %p86
      %p89 = scmp.ne.s32.totalorder %s74, %s88
      %p90 = scmp.eq.s32.totalorder %s22, 0
      %p91 = por %p89, %p90
      %s93 = sadd.s32 %s92, 1
      %p96 = scmp.eq.s32.totalorder %s16, 1
      %p97 = scmp.ne.s32.totalorder %s92, %s94
      %p98 = scmp.eq.s32.totalorder %s16, 0
      %p99 = por %p97, %p98
      %p100 = scmp.ne.s32.totalorder %s92, %s94
      %p101 = scmp.eq.s32.totalorder %s21, 1
      %p102 = por %p100, %p101
      %p103 = scmp.ne.s32.totalorder %s94, %s95
      %p104 = scmp.eq.s32.totalorder %s21, 0
      %p105 = por %p103, %p104
      %p106 = scmp.ne.s32.totalorder %s94, %s95
      %p107 = scmp.eq.s32.totalorder %s22, 1
      %p108 = por %p106, %p107
      %p110 = scmp.ne.s32.totalorder %s95, %s109
      %p111 = scmp.eq.s32.totalorder %s22, 0
      %p112 = por %p110, %p111
      %s114 = sadd.s32 %s113, 1
      %p117 = scmp.eq.s32.totalorder %s16, 1
      %p118 = scmp.ne.s32.totalorder %s113, %s115
      %p119 = scmp.eq.s32.totalorder %s16, 0
      %p120 = por %p118, %p119
      %p121 = scmp.ne.s32.totalorder %s113, %s115
      %p122 = scmp.eq.s32.totalorder %s21, 1
      %p123 = por %p121, %p122
      %p124 = scmp.ne.s32.totalorder %s115, %s116
      %p125 = scmp.eq.s32.totalorder %s21, 0
      %p126 = por %p124, %p125
      %p127 = scmp.ne.s32.totalorder %s115, %s116
      %p128 = scmp.eq.s32.totalorder %s22, 1
      %p129 = por %p127, %p128
      %p131 = scmp.ne.s32.totalorder %s116, %s130
      %p132 = scmp.eq.s32.totalorder %s22, 0
      %p133 = por %p131, %p132
      %s135 = sadd.s32 %s134, 1
      %p138 = scmp.eq.s32.totalorder %s16, 1
      %p139 = scmp.ne.s32.totalorder %s134, %s136
      %p140 = scmp.eq.s32.totalorder %s16, 0
      %p141 = por %p139, %p140
      %p142 = scmp.ne.s32.totalorder %s134, %s136
      %p143 = scmp.eq.s32.totalorder %s21, 1
      %p144 = por %p142, %p143
      %p145 = scmp.ne.s32.totalorder %s136, %s137
      %p146 = scmp.eq.s32.totalorder %s21, 0
      %p147 = por %p145, %p146
      %p148 = scmp.ne.s32.totalorder %s136, %s137
      %p149 = scmp.eq.s32.totalorder %s22, 1
      %p150 = por %p148, %p149
      %p152 = scmp.ne.s32.totalorder %s137, %s151
      %p153 = scmp.eq.s32.totalorder %s22, 0
      %p154 = por %p152, %p153
      %s156 = sadd.s32 %s155, 1
      %p159 = scmp.eq.s32.totalorder %s16, 1
      %p160 = scmp.ne.s32.totalorder %s155, %s157
      %p161 = scmp.eq.s32.totalorder %s16, 0
      %p162 = por %p160, %p161
      %p163 = scmp.ne.s32.totalorder %s155, %s157
      %p164 = scmp.eq.s32.totalorder %s21, 1
      %p165 = por %p163, %p164
      %p166 = scmp.ne.s32.totalorder %s157, %s158
      %p167 = scmp.eq.s32.totalorder %s21, 0
      %p168 = por %p166, %p167
      %p169 = scmp.ne.s32.totalorder %s157, %s158
      %p170 = scmp.eq.s32.totalorder %s22, 1
      %p171 = por %p169, %p170
      %p173 = scmp.ne.s32.totalorder %s158, %s172
      %p174 = scmp.eq.s32.totalorder %s22, 0
      %p175 = por %p173, %p174
      %s176 = ssub.s32 %s16, %s23
      %p177 = scmp.eq.s32.totalorder %s176, 0
      %s179 = sadd.s32 %s178, 1
      %s180 = scalar_select %p177, %s178, %s179
      %p183 = pneg %p177
      %p184 = scmp.eq.s32.totalorder %s16, 1
      %p185 = por %p183, %p184
      %p186 = scmp.ne.s32.totalorder %s178, %s181
      %p187 = scmp.eq.s32.totalorder %s16, 0
      %p188 = por %p186, %p187
      %p189 = scmp.ne.s32.totalorder %s178, %s181
      %p190 = scmp.eq.s32.totalorder %s21, 1
      %p191 = por %p189, %p190
      %p192 = scmp.ne.s32.totalorder %s181, %s182
      %p193 = scmp.eq.s32.totalorder %s21, 0
      %p194 = por %p192, %p193
      %p195 = scmp.ne.s32.totalorder %s181, %s182
      %p196 = scmp.eq.s32.totalorder %s22, 1
      %p197 = por %p195, %p196
      %p199 = scmp.ne.s32.totalorder %s182, %s198
      %p200 = scmp.eq.s32.totalorder %s22, 0
      %p201 = por %p199, %p200
      %p202 = scmp.le.s32.totalorder 1, %s16
      %p203 = scmp.lt.s32.totalorder %s16, 3
      %p204 = pnand %p202, %p203
      %p205 = pneg %p204
      // Predicated region
      $region9: #{tpu_custom_call.1} parent=5 // pred_check
        _
      $region10: #{tpu_custom_call.1} parent=5 // pred_check_branch
        %207 = sbr.rel (%p204) target = $region12
      $region11: #{tpu_custom_call.1} parent=5 // pred_region
        %s208 = ssub.s32 %s16, 1
        // Predicated region
        $region13: #{tpu_custom_call.1} parent=11 // pred_check
          %p209 = pneg %p63
        $region14: #{tpu_custom_call.1} parent=11 // pred_check_branch
          %211 = sbr.rel (%p209) target = $region16
        $region15: #{tpu_custom_call.1} parent=11 // pred_region
          _
        $region16: #{tpu_custom_call.1} parent=11 // pred_fallthru
          _
        // Predicated region
        $region17: #{tpu_custom_call.1} parent=11 // pred_check
          %p212 = pneg %p84
        $region18: #{tpu_custom_call.1} parent=11 // pred_check_branch
          %214 = sbr.rel (%p212) target = $region20
        $region19: #{tpu_custom_call.1} parent=11 // pred_region
          _
        $region20: #{tpu_custom_call.1} parent=11 // pred_fallthru
          _
        // Predicated region
        $region21: #{tpu_custom_call.1} parent=11 // pred_check
          %p215 = pneg %p105
        $region22: #{tpu_custom_call.1} parent=11 // pred_check_branch
          %217 = sbr.rel (%p215) target = $region24
        $region23: #{tpu_custom_call.1} parent=11 // pred_region
          _
        $region24: #{tpu_custom_call.1} parent=11 // pred_fallthru
          _
        // Predicated region
        $region25: #{tpu_custom_call.1} parent=11 // pred_check
          %p218 = pneg %p126
        $region26: #{tpu_custom_call.1} parent=11 // pred_check_branch
          %220 = sbr.rel (%p218) target = $region28
        $region27: #{tpu_custom_call.1} parent=11 // pred_region
          _
        $region28: #{tpu_custom_call.1} parent=11 // pred_fallthru
          _
        // Predicated region
        $region29: #{tpu_custom_call.1} parent=11 // pred_check
          %p221 = pneg %p147
        $region30: #{tpu_custom_call.1} parent=11 // pred_check_branch
          %223 = sbr.rel (%p221) target = $region32
        $region31: #{tpu_custom_call.1} parent=11 // pred_region
          _
        $region32: #{tpu_custom_call.1} parent=11 // pred_fallthru
          _
        // Predicated region
        $region33: #{tpu_custom_call.1} parent=11 // pred_check
          %p224 = pneg %p168
        $region34: #{tpu_custom_call.1} parent=11 // pred_check_branch
          %226 = sbr.rel (%p224) target = $region36
        $region35: #{tpu_custom_call.1} parent=11 // pred_region
          _
        $region36: #{tpu_custom_call.1} parent=11 // pred_fallthru
          _
      $region12: #{tpu_custom_call.1} parent=5 // pred_fallthru
        _
      %p227 = scmp.lt.s32.totalorder %s16, 2
      // Predicated region
      $region37: #{tpu_custom_call.1} parent=5 // pred_check
        %p228 = pneg %p227
      $region38: #{tpu_custom_call.1} parent=5 // pred_check_branch
        %230 = sbr.rel (%p228) target = $region40
      $region39: #{tpu_custom_call.1} parent=5 // pred_region
        // Predicated region
        $region41: #{tpu_custom_call.1} parent=39 // pred_check
          %p231 = pneg %p36
        $region42: #{tpu_custom_call.1} parent=39 // pred_check_branch
          %233 = sbr.rel (%p231) target = $region44
        $region43: #{tpu_custom_call.1} parent=39 // pred_region
          %s234 = smul.u32 16, %s16
          %p235 = scmp.lt.s32.totalorder %s234, 31
          %s236 = scalar_select %p235, %s234, 31
          %s237 = smul.addr %s236, 8
          %s238 = scalar_lea.vmem %s0, %s237
          %s239 = smul.u32 16, %s16
        $region44: #{tpu_custom_call.1} parent=39 // pred_fallthru
          _
      $region40: #{tpu_custom_call.1} parent=5 // pred_fallthru
        _
      %p240 = scmp.le.s32.totalorder 1, %s16
      %p241 = scmp.lt.s32.totalorder %s16, 3
      %p242 = pnand %p240, %p241
      %p243 = pneg %p242
      // Predicated region
      $region45: #{tpu_custom_call.1} parent=5 // pred_check
        _
      $region46: #{tpu_custom_call.1} parent=5 // pred_check_branch
        %245 = sbr.rel (%p242) target = $region48
      $region47: #{tpu_custom_call.1} parent=5 // pred_region
        %s246 = ssub.s32 %s16, 1
        %s247 = smul.u32 16, %s21
        %p248 = scmp.lt.s32.totalorder %s247, 31
        %s249 = scalar_select %p248, %s247, 31
        %s250 = smul.addr %s249, 8
        %s251 = scalar_lea.vmem %s0, %s250
        %p252 = pneg %p42
        %p253 = pneg %p39
        %p254 = pneg %p63
        %p255 = pneg %p60
        %p256 = pneg %p84
        %p257 = pneg %p81
        %p258 = pneg %p105
        %p259 = pneg %p102
        %p260 = pneg %p126
        %p261 = pneg %p123
        %p262 = pneg %p147
        %p263 = pneg %p144
        %p264 = pneg %p168
        %p265 = pneg %p165
        %p266 = pneg %p194
        %p267 = pneg %p191
        %s268 = sand.u32 %s181, 1
        %s269 = scalar_lea.sflag [#allocation3], %s268
        %s270 = sand.u32 %s181, 1
        %s271 = smul.addr %s270, 128
        %s272 = scalar_lea.vmem [#allocation2], %s271
        %s273 = smul.u32 16, %s21
        %p274 = scmp.lt.s32.totalorder %s273, 31
        %s275 = scalar_select %p274, %s273, 31
        %s276 = smul.addr %s275, 8
        %s277 = scalar_lea.vmem %s0, %s276
        %s278 = smul.u32 16, %s21
        %s279 = smul.u32 16, %s21
        %v280 = vld [vmem:[%s277] sm:$0xff]
        %v281 = vld [vmem:[%s277 + $0x8] sm:$0xff]
        %v282 = vld [vmem:[%s277 + $0x10] sm:$0xff]
        %v283 = vld [vmem:[%s277 + $0x18] sm:$0xff]
        %v284 = vld [vmem:[%s277 + $0x20] sm:$0xff]
        %v285 = vld [vmem:[%s277 + $0x28] sm:$0xff]
        %v286 = vld [vmem:[%s277 + $0x30] sm:$0xff]
        %v287 = vld [vmem:[%s277 + $0x38] sm:$0xff]
        %v288 = vld [vmem:[%s277 + $0x40] sm:$0xff]
        %v289 = vld [vmem:[%s277 + $0x48] sm:$0xff]
        %v290 = vld [vmem:[%s277 + $0x50] sm:$0xff]
        %v291 = vld [vmem:[%s277 + $0x58] sm:$0xff]
        %v292 = vld [vmem:[%s277 + $0x60] sm:$0xff]
        %v293 = vld [vmem:[%s277 + $0x68] sm:$0xff]
        %v294 = vld [vmem:[%s277 + $0x70] sm:$0xff]
        %v295 = vld [vmem:[%s277 + $0x78] sm:$0xff]
        %v296 = vld [vmem:[%s1] sm:$0xff]
        %v297 = vld [vmem:[%s1 + $0x8] sm:$0xff]
        %v298 = vld [vmem:[%s2] sm:$0x1]
        %v300 = vperm.slane %v298, 0
        %vm302 = vcmask 130048
        %v304 = vsel %vm302, %v280, 0
        %v307 = vsel %vm302, %v281, 0
        %v310 = vsel %vm302, %v282, 0
        %v313 = vsel %vm302, %v283, 0
        %v316 = vsel %vm302, %v284, 0
        %v319 = vsel %vm302, %v285, 0
        %v322 = vsel %vm302, %v286, 0
        %v325 = vsel %vm302, %v287, 0
        %v328 = vsel %vm302, %v288, 0
        %v331 = vsel %vm302, %v289, 0
        %v334 = vsel %vm302, %v290, 0
        %v337 = vsel %vm302, %v291, 0
        %v340 = vsel %vm302, %v292, 0
        %v343 = vsel %vm302, %v293, 0
        %v346 = vsel %vm302, %v294, 0
        %v349 = vsel %vm302, %v295, 0
        %351 = vmatpush.msra.mxu0 0.0
        %352 = vmatpush.msra.mxu0 0.0
        %353 = vmatpush.msra.mxu0 0.0
        %354 = vmatpush.msra.mxu0 0.0
        %355 = vmatpush.msra.mxu0 0.0
        %356 = vmatpush.msra.mxu0 0.0
        %357 = vmatpush.msra.mxu0 0.0
        %358 = vmatpush.msra.mxu0 0.0
        %359 = vmatpush.msra.mxu0 0.0
        %360 = vmatpush.msra.mxu0 0.0
        %361 = vmatpush.msra.mxu0 0.0
        %362 = vmatpush.msra.mxu0 0.0
        %363 = vmatpush.msra.mxu0 0.0
        %364 = vmatpush.msra.mxu0 0.0
        %365 = vmatpush.msra.mxu0 %v297
        %366 = vmatpush.msra.mxu0 %v296
        %367 = vmatmul.f32.gmra.mxu0 %v304
        %v368 = vpop.f32.mrf.mxu0
        %v369 = vadd.f32 %v300, %v368
        %370 = vmatmul.f32.gmra.mxu0 %v307
        %v371 = vpop.f32.mrf.mxu0
        %v372 = vadd.f32 %v300, %v371
        %373 = vmatmul.f32.gmra.mxu0 %v310
        %v374 = vpop.f32.mrf.mxu0
        %v375 = vadd.f32 %v300, %v374
        %376 = vmatmul.f32.gmra.mxu0 %v313
        %v377 = vpop.f32.mrf.mxu0
        %v378 = vadd.f32 %v300, %v377
        %379 = vmatmul.f32.gmra.mxu0 %v316
        %v380 = vpop.f32.mrf.mxu0
        %v381 = vadd.f32 %v300, %v380
        %382 = vmatmul.f32.gmra.mxu0 %v319
        %v383 = vpop.f32.mrf.mxu0
        %v384 = vadd.f32 %v300, %v383
        %385 = vmatmul.f32.gmra.mxu0 %v322
        %v386 = vpop.f32.mrf.mxu0
        %v387 = vadd.f32 %v300, %v386
        %388 = vmatmul.f32.gmra.mxu0 %v325
        %v389 = vpop.f32.mrf.mxu0
        %v390 = vadd.f32 %v300, %v389
        %391 = vmatmul.f32.gmra.mxu0 %v328
        %v392 = vpop.f32.mrf.mxu0
        %v393 = vadd.f32 %v300, %v392
        %394 = vmatmul.f32.gmra.mxu0 %v331
        %v395 = vpop.f32.mrf.mxu0
        %v396 = vadd.f32 %v300, %v395
        %397 = vmatmul.f32.gmra.mxu0 %v334
        %v398 = vpop.f32.mrf.mxu0
        %v399 = vadd.f32 %v300, %v398
        %400 = vmatmul.f32.gmra.mxu0 %v337
        %v401 = vpop.f32.mrf.mxu0
        %v402 = vadd.f32 %v300, %v401
        %403 = vmatmul.f32.gmra.mxu0 %v340
        %v404 = vpop.f32.mrf.mxu0
        %v405 = vadd.f32 %v300, %v404
        %406 = vmatmul.f32.gmra.mxu0 %v343
        %v407 = vpop.f32.mrf.mxu0
        %v408 = vadd.f32 %v300, %v407
        %409 = vmatmul.f32.gmra.mxu0 %v346
        %v410 = vpop.f32.mrf.mxu0
        %v411 = vadd.f32 %v300, %v410
        %412 = vmatmul.f32.gmra.mxu0 %v349
        %v413 = vpop.f32.mrf.mxu0
        %v414 = vadd.f32 %v300, %v413
        %415 = vdwg.mxu0
        %v416 = vmax.f32 %v369, 0.0
        %v417 = vmax.f32 %v372, 0.0
        %v418 = vmax.f32 %v375, 0.0
        %v419 = vmax.f32 %v378, 0.0
        %v420 = vmax.f32 %v381, 0.0
        %v421 = vmax.f32 %v384, 0.0
        %v422 = vmax.f32 %v387, 0.0
        %v423 = vmax.f32 %v390, 0.0
        %v424 = vmax.f32 %v393, 0.0
        %v425 = vmax.f32 %v396, 0.0
        %v426 = vmax.f32 %v399, 0.0
        %v427 = vmax.f32 %v402, 0.0
        %v428 = vmax.f32 %v405, 0.0
        %v429 = vmax.f32 %v408, 0.0
        %v430 = vmax.f32 %v411, 0.0
        %v431 = vmax.f32 %v414, 0.0
        %v432 = vld [vmem:[%s3] sm:$0xff]
        %v433 = vld [vmem:[%s3 + $0x8] sm:$0xff]
        %v434 = vld [vmem:[%s3 + $0x10] sm:$0xff]
        %v435 = vld [vmem:[%s3 + $0x18] sm:$0xff]
        %v436 = vld [vmem:[%s4] sm:$0x1]
        %v438 = vperm.slane %v436, 0
        %vm440 = vcmask 261120
        %v442 = vsel %vm440, %v416, 0
        %v445 = vsel %vm440, %v417, 0
        %v448 = vsel %vm440, %v418, 0
        %v451 = vsel %vm440, %v419, 0
        %v454 = vsel %vm440, %v420, 0
        %v457 = vsel %vm440, %v421, 0
        %v460 = vsel %vm440, %v422, 0
        %v463 = vsel %vm440, %v423, 0
        %v466 = vsel %vm440, %v424, 0
        %v469 = vsel %vm440, %v425, 0
        %v472 = vsel %vm440, %v426, 0
        %v475 = vsel %vm440, %v427, 0
        %v478 = vsel %vm440, %v428, 0
        %v481 = vsel %vm440, %v429, 0
        %v484 = vsel %vm440, %v430, 0
        %v487 = vsel %vm440, %v431, 0
        %489 = vmatpush.msra.mxu0 0.0
        %490 = vmatpush.msra.mxu0 0.0
        %491 = vmatpush.msra.mxu0 0.0
        %492 = vmatpush.msra.mxu0 0.0
        %493 = vmatpush.msra.mxu0 0.0
        %494 = vmatpush.msra.mxu0 0.0
        %495 = vmatpush.msra.mxu0 0.0
        %496 = vmatpush.msra.mxu0 0.0
        %497 = vmatpush.msra.mxu0 0.0
        %498 = vmatpush.msra.mxu0 0.0
        %499 = vmatpush.msra.mxu0 0.0
        %500 = vmatpush.msra.mxu0 0.0
        %501 = vmatpush.msra.mxu0 %v435
        %502 = vmatpush.msra.mxu0 %v434
        %503 = vmatpush.msra.mxu0 %v433
        %504 = vmatpush.msra.mxu0 %v432
        %505 = vmatmul.f32.gmra.mxu0 %v442
        %v506 = vpop.f32.mrf.mxu0
        %v507 = vadd.f32 %v438, %v506
        %508 = vmatmul.f32.gmra.mxu0 %v445
        %v509 = vpop.f32.mrf.mxu0
        %v510 = vadd.f32 %v438, %v509
        %511 = vmatmul.f32.gmra.mxu0 %v448
        %v512 = vpop.f32.mrf.mxu0
        %v513 = vadd.f32 %v438, %v512
        %514 = vmatmul.f32.gmra.mxu0 %v451
        %v515 = vpop.f32.mrf.mxu0
        %v516 = vadd.f32 %v438, %v515
        %517 = vmatmul.f32.gmra.mxu0 %v454
        %v518 = vpop.f32.mrf.mxu0
        %v519 = vadd.f32 %v438, %v518
        %520 = vmatmul.f32.gmra.mxu0 %v457
        %v521 = vpop.f32.mrf.mxu0
        %v522 = vadd.f32 %v438, %v521
        %523 = vmatmul.f32.gmra.mxu0 %v460
        %v524 = vpop.f32.mrf.mxu0
        %v525 = vadd.f32 %v438, %v524
        %526 = vmatmul.f32.gmra.mxu0 %v463
        %v527 = vpop.f32.mrf.mxu0
        %v528 = vadd.f32 %v438, %v527
        %529 = vmatmul.f32.gmra.mxu0 %v466
        %v530 = vpop.f32.mrf.mxu0
        %v531 = vadd.f32 %v438, %v530
        %532 = vmatmul.f32.gmra.mxu0 %v469
        %v533 = vpop.f32.mrf.mxu0
        %v534 = vadd.f32 %v438, %v533
        %535 = vmatmul.f32.gmra.mxu0 %v472
        %v536 = vpop.f32.mrf.mxu0
        %v537 = vadd.f32 %v438, %v536
        %538 = vmatmul.f32.gmra.mxu0 %v475
        %v539 = vpop.f32.mrf.mxu0
        %v540 = vadd.f32 %v438, %v539
        %541 = vmatmul.f32.gmra.mxu0 %v478
        %v542 = vpop.f32.mrf.mxu0
        %v543 = vadd.f32 %v438, %v542
        %544 = vmatmul.f32.gmra.mxu0 %v481
        %v545 = vpop.f32.mrf.mxu0
        %v546 = vadd.f32 %v438, %v545
        %547 = vmatmul.f32.gmra.mxu0 %v484
        %v548 = vpop.f32.mrf.mxu0
        %v549 = vadd.f32 %v438, %v548
        %550 = vmatmul.f32.gmra.mxu0 %v487
        %v551 = vpop.f32.mrf.mxu0
        %v552 = vadd.f32 %v438, %v551
        %553 = vdwg.mxu0
        %v554 = vmax.f32 %v507, 0.0
        %v555 = vmax.f32 %v510, 0.0
        %v556 = vmax.f32 %v513, 0.0
        %v557 = vmax.f32 %v516, 0.0
        %v558 = vmax.f32 %v519, 0.0
        %v559 = vmax.f32 %v522, 0.0
        %v560 = vmax.f32 %v525, 0.0
        %v561 = vmax.f32 %v528, 0.0
        %v562 = vmax.f32 %v531, 0.0
        %v563 = vmax.f32 %v534, 0.0
        %v564 = vmax.f32 %v537, 0.0
        %v565 = vmax.f32 %v540, 0.0
        %v566 = vmax.f32 %v543, 0.0
        %v567 = vmax.f32 %v546, 0.0
        %v568 = vmax.f32 %v549, 0.0
        %v569 = vmax.f32 %v552, 0.0
        %v570 = vld [vmem:[%s5] sm:$0xff]
        %v571 = vld [vmem:[%s5 + $0x8] sm:$0xff]
        %v572 = vld [vmem:[%s5 + $0x10] sm:$0xff]
        %v573 = vld [vmem:[%s5 + $0x18] sm:$0xff]
        %v574 = vld [vmem:[%s6] sm:$0x1]
        %v576 = vperm.slane %v574, 0
        %v579 = vsel %vm440, %v554, 0
        %v582 = vsel %vm440, %v555, 0
        %v585 = vsel %vm440, %v556, 0
        %v588 = vsel %vm440, %v557, 0
        %v591 = vsel %vm440, %v558, 0
        %v594 = vsel %vm440, %v559, 0
        %v597 = vsel %vm440, %v560, 0
        %v600 = vsel %vm440, %v561, 0
        %v603 = vsel %vm440, %v562, 0
        %v606 = vsel %vm440, %v563, 0
        %v609 = vsel %vm440, %v564, 0
        %v612 = vsel %vm440, %v565, 0
        %v615 = vsel %vm440, %v566, 0
        %v618 = vsel %vm440, %v567, 0
        %v621 = vsel %vm440, %v568, 0
        %v624 = vsel %vm440, %v569, 0
        %626 = vmatpush.msra.mxu0 0.0
        %627 = vmatpush.msra.mxu0 0.0
        %628 = vmatpush.msra.mxu0 0.0
        %629 = vmatpush.msra.mxu0 0.0
        %630 = vmatpush.msra.mxu0 0.0
        %631 = vmatpush.msra.mxu0 0.0
        %632 = vmatpush.msra.mxu0 0.0
        %633 = vmatpush.msra.mxu0 0.0
        %634 = vmatpush.msra.mxu0 0.0
        %635 = vmatpush.msra.mxu0 0.0
        %636 = vmatpush.msra.mxu0 0.0
        %637 = vmatpush.msra.mxu0 0.0
        %638 = vmatpush.msra.mxu0 %v573
        %639 = vmatpush.msra.mxu0 %v572
        %640 = vmatpush.msra.mxu0 %v571
        %641 = vmatpush.msra.mxu0 %v570
        %642 = vmatmul.f32.gmra.mxu0 %v579
        %v643 = vpop.f32.mrf.mxu0
        %v644 = vadd.f32 %v576, %v643
        %645 = vmatmul.f32.gmra.mxu0 %v582
        %v646 = vpop.f32.mrf.mxu0
        %v647 = vadd.f32 %v576, %v646
        %648 = vmatmul.f32.gmra.mxu0 %v585
        %v649 = vpop.f32.mrf.mxu0
        %v650 = vadd.f32 %v576, %v649
        %651 = vmatmul.f32.gmra.mxu0 %v588
        %v652 = vpop.f32.mrf.mxu0
        %v653 = vadd.f32 %v576, %v652
        %654 = vmatmul.f32.gmra.mxu0 %v591
        %v655 = vpop.f32.mrf.mxu0
        %v656 = vadd.f32 %v576, %v655
        %657 = vmatmul.f32.gmra.mxu0 %v594
        %v658 = vpop.f32.mrf.mxu0
        %v659 = vadd.f32 %v576, %v658
        %660 = vmatmul.f32.gmra.mxu0 %v597
        %v661 = vpop.f32.mrf.mxu0
        %v662 = vadd.f32 %v576, %v661
        %663 = vmatmul.f32.gmra.mxu0 %v600
        %v664 = vpop.f32.mrf.mxu0
        %v665 = vadd.f32 %v576, %v664
        %666 = vmatmul.f32.gmra.mxu0 %v603
        %v667 = vpop.f32.mrf.mxu0
        %v668 = vadd.f32 %v576, %v667
        %669 = vmatmul.f32.gmra.mxu0 %v606
        %v670 = vpop.f32.mrf.mxu0
        %v671 = vadd.f32 %v576, %v670
        %672 = vmatmul.f32.gmra.mxu0 %v609
        %v673 = vpop.f32.mrf.mxu0
        %v674 = vadd.f32 %v576, %v673
        %675 = vmatmul.f32.gmra.mxu0 %v612
        %v676 = vpop.f32.mrf.mxu0
        %v677 = vadd.f32 %v576, %v676
        %678 = vmatmul.f32.gmra.mxu0 %v615
        %v679 = vpop.f32.mrf.mxu0
        %v680 = vadd.f32 %v576, %v679
        %681 = vmatmul.f32.gmra.mxu0 %v618
        %v682 = vpop.f32.mrf.mxu0
        %v683 = vadd.f32 %v576, %v682
        %684 = vmatmul.f32.gmra.mxu0 %v621
        %v685 = vpop.f32.mrf.mxu0
        %v686 = vadd.f32 %v576, %v685
        %687 = vmatmul.f32.gmra.mxu0 %v624
        %v688 = vpop.f32.mrf.mxu0
        %v689 = vadd.f32 %v576, %v688
        %690 = vdwg.mxu0
        %691 = vmax.xlane.f32.xlu0 %v644
        %v692 = vpop.xlane.xlu0 %691
        %693 = vmax.xlane.f32.xlu0 %v647
        %v694 = vpop.xlane.xlu0 %693
        %695 = vmax.xlane.f32.xlu0 %v650
        %v696 = vpop.xlane.xlu0 %695
        %697 = vmax.xlane.f32.xlu0 %v653
        %v698 = vpop.xlane.xlu0 %697
        %699 = vmax.xlane.f32.xlu0 %v656
        %v700 = vpop.xlane.xlu0 %699
        %701 = vmax.xlane.f32.xlu0 %v659
        %v702 = vpop.xlane.xlu0 %701
        %703 = vmax.xlane.f32.xlu0 %v662
        %v704 = vpop.xlane.xlu0 %703
        %705 = vmax.xlane.f32.xlu0 %v665
        %v706 = vpop.xlane.xlu0 %705
        %707 = vmax.xlane.f32.xlu0 %v668
        %v708 = vpop.xlane.xlu0 %707
        %709 = vmax.xlane.f32.xlu0 %v671
        %v710 = vpop.xlane.xlu0 %709
        %711 = vmax.xlane.f32.xlu0 %v674
        %v712 = vpop.xlane.xlu0 %711
        %713 = vmax.xlane.f32.xlu0 %v677
        %v714 = vpop.xlane.xlu0 %713
        %715 = vmax.xlane.f32.xlu0 %v680
        %v716 = vpop.xlane.xlu0 %715
        %717 = vmax.xlane.f32.xlu0 %v683
        %v718 = vpop.xlane.xlu0 %717
        %719 = vmax.xlane.f32.xlu0 %v686
        %v720 = vpop.xlane.xlu0 %719
        %721 = vmax.xlane.f32.xlu0 %v689
        %v722 = vpop.xlane.xlu0 %721
        %v723 = vsub.f32 %v644, %v692
        %v724 = vsub.f32 %v647, %v694
        %v725 = vsub.f32 %v650, %v696
        %v726 = vsub.f32 %v653, %v698
        %v727 = vsub.f32 %v656, %v700
        %v728 = vsub.f32 %v659, %v702
        %v729 = vsub.f32 %v662, %v704
        %v730 = vsub.f32 %v665, %v706
        %v731 = vsub.f32 %v668, %v708
        %v732 = vsub.f32 %v671, %v710
        %v733 = vsub.f32 %v674, %v712
        %v734 = vsub.f32 %v677, %v714
        %v735 = vsub.f32 %v680, %v716
        %v736 = vsub.f32 %v683, %v718
        %v737 = vsub.f32 %v686, %v720
        %v738 = vsub.f32 %v689, %v722
        %v739 = vmul.f32 %v723, 1.442695
        %v740 = vpow.pop %v739
        %v741 = vmul.f32 %v724, 1.442695
        %v742 = vpow.pop %v741
        %v743 = vmul.f32 %v725, 1.442695
        %v744 = vpow.pop %v743
        %v745 = vmul.f32 %v726, 1.442695
        %v746 = vpow.pop %v745
        %v747 = vmul.f32 %v727, 1.442695
        %v748 = vpow.pop %v747
        %v749 = vmul.f32 %v728, 1.442695
        %v750 = vpow.pop %v749
        %v751 = vmul.f32 %v729, 1.442695
        %v752 = vpow.pop %v751
        %v753 = vmul.f32 %v730, 1.442695
        %v754 = vpow.pop %v753
        %v755 = vmul.f32 %v731, 1.442695
        %v756 = vpow.pop %v755
        %v757 = vmul.f32 %v732, 1.442695
        %v758 = vpow.pop %v757
        %v759 = vmul.f32 %v733, 1.442695
        %v760 = vpow.pop %v759
        %v761 = vmul.f32 %v734, 1.442695
        %v762 = vpow.pop %v761
        %v763 = vmul.f32 %v735, 1.442695
        %v764 = vpow.pop %v763
        %v765 = vmul.f32 %v736, 1.442695
        %v766 = vpow.pop %v765
        %v767 = vmul.f32 %v737, 1.442695
        %v768 = vpow.pop %v767
        %v769 = vmul.f32 %v738, 1.442695
        %v770 = vpow.pop %v769
        %771 = vadd.xlane.f32.xlu0 %v740
        %v772 = vpop.xlane.xlu0 %771
        %773 = vadd.xlane.f32.xlu0 %v742
        %v774 = vpop.xlane.xlu0 %773
        %775 = vadd.xlane.f32.xlu0 %v744
        %v776 = vpop.xlane.xlu0 %775
        %777 = vadd.xlane.f32.xlu0 %v746
        %v778 = vpop.xlane.xlu0 %777
        %779 = vadd.xlane.f32.xlu0 %v748
        %v780 = vpop.xlane.xlu0 %779
        %781 = vadd.xlane.f32.xlu0 %v750
        %v782 = vpop.xlane.xlu0 %781
        %783 = vadd.xlane.f32.xlu0 %v752
        %v784 = vpop.xlane.xlu0 %783
        %785 = vadd.xlane.f32.xlu0 %v754
        %v786 = vpop.xlane.xlu0 %785
        %787 = vadd.xlane.f32.xlu0 %v756
        %v788 = vpop.xlane.xlu0 %787
        %789 = vadd.xlane.f32.xlu0 %v758
        %v790 = vpop.xlane.xlu0 %789
        %791 = vadd.xlane.f32.xlu0 %v760
        %v792 = vpop.xlane.xlu0 %791
        %793 = vadd.xlane.f32.xlu0 %v762
        %v794 = vpop.xlane.xlu0 %793
        %795 = vadd.xlane.f32.xlu0 %v764
        %v796 = vpop.xlane.xlu0 %795
        %797 = vadd.xlane.f32.xlu0 %v766
        %v798 = vpop.xlane.xlu0 %797
        %799 = vadd.xlane.f32.xlu0 %v768
        %v800 = vpop.xlane.xlu0 %799
        %801 = vadd.xlane.f32.xlu0 %v770
        %v802 = vpop.xlane.xlu0 %801
        %v803 = vrcp.pop %v772
        %v804 = vmul.f32 %v772, %v803
        %v805 = vsub.f32 1.0, %v804
        %v806 = vmul.f32 %v803, %v805
        %v807 = vadd.f32 %v803, %v806
        %vm808 = vweird.f32 %v772
        %vm809 = vweird.f32 %v803
        %vm810 = vmor %vm808, %vm809
        %v811 = vsel %vm810, %v803, %v807
        %v812 = vand.u32 2147483647, %v772
        %vm813 = vcmp.eq.f32.partialorder %v812, 8.507059e+37
        %v814 = vand.u32 %v772, 2147483648
        %v815 = vor.u32 1.1754944e-38, %v814
        %v816 = vsel %vm813, %v815, %v811
        %v817 = vrcp.pop %v774
        %v818 = vmul.f32 %v774, %v817
        %v819 = vsub.f32 1.0, %v818
        %v820 = vmul.f32 %v817, %v819
        %v821 = vadd.f32 %v817, %v820
        %vm822 = vweird.f32 %v774
        %vm823 = vweird.f32 %v817
        %vm824 = vmor %vm822, %vm823
        %v825 = vsel %vm824, %v817, %v821
        %v826 = vand.u32 2147483647, %v774
        %vm827 = vcmp.eq.f32.partialorder %v826, 8.507059e+37
        %v828 = vand.u32 %v774, 2147483648
        %v829 = vor.u32 1.1754944e-38, %v828
        %v830 = vsel %vm827, %v829, %v825
        %v831 = vrcp.pop %v776
        %v832 = vmul.f32 %v776, %v831
        %v833 = vsub.f32 1.0, %v832
        %v834 = vmul.f32 %v831, %v833
        %v835 = vadd.f32 %v831, %v834
        %vm836 = vweird.f32 %v776
        %vm837 = vweird.f32 %v831
        %vm838 = vmor %vm836, %vm837
        %v839 = vsel %vm838, %v831, %v835
        %v840 = vand.u32 2147483647, %v776
        %vm841 = vcmp.eq.f32.partialorder %v840, 8.507059e+37
        %v842 = vand.u32 %v776, 2147483648
        %v843 = vor.u32 1.1754944e-38, %v842
        %v844 = vsel %vm841, %v843, %v839
        %v845 = vrcp.pop %v778
        %v846 = vmul.f32 %v778, %v845
        %v847 = vsub.f32 1.0, %v846
        %v848 = vmul.f32 %v845, %v847
        %v849 = vadd.f32 %v845, %v848
        %vm850 = vweird.f32 %v778
        %vm851 = vweird.f32 %v845
        %vm852 = vmor %vm850, %vm851
        %v853 = vsel %vm852, %v845, %v849
        %v854 = vand.u32 2147483647, %v778
        %vm855 = vcmp.eq.f32.partialorder %v854, 8.507059e+37
        %v856 = vand.u32 %v778, 2147483648
        %v857 = vor.u32 1.1754944e-38, %v856
        %v858 = vsel %vm855, %v857, %v853
        %v859 = vrcp.pop %v780
        %v860 = vmul.f32 %v780, %v859
        %v861 = vsub.f32 1.0, %v860
        %v862 = vmul.f32 %v859, %v861
        %v863 = vadd.f32 %v859, %v862
        %vm864 = vweird.f32 %v780
        %vm865 = vweird.f32 %v859
        %vm866 = vmor %vm864, %vm865
        %v867 = vsel %vm866, %v859, %v863
        %v868 = vand.u32 2147483647, %v780
        %vm869 = vcmp.eq.f32.partialorder %v868, 8.507059e+37
        %v870 = vand.u32 %v780, 2147483648
        %v871 = vor.u32 1.1754944e-38, %v870
        %v872 = vsel %vm869, %v871, %v867
        %v873 = vrcp.pop %v782
        %v874 = vmul.f32 %v782, %v873
        %v875 = vsub.f32 1.0, %v874
        %v876 = vmul.f32 %v873, %v875
        %v877 = vadd.f32 %v873, %v876
        %vm878 = vweird.f32 %v782
        %vm879 = vweird.f32 %v873
        %vm880 = vmor %vm878, %vm879
        %v881 = vsel %vm880, %v873, %v877
        %v882 = vand.u32 2147483647, %v782
        %vm883 = vcmp.eq.f32.partialorder %v882, 8.507059e+37
        %v884 = vand.u32 %v782, 2147483648
        %v885 = vor.u32 1.1754944e-38, %v884
        %v886 = vsel %vm883, %v885, %v881
        %v887 = vrcp.pop %v784
        %v888 = vmul.f32 %v784, %v887
        %v889 = vsub.f32 1.0, %v888
        %v890 = vmul.f32 %v887, %v889
        %v891 = vadd.f32 %v887, %v890
        %vm892 = vweird.f32 %v784
        %vm893 = vweird.f32 %v887
        %vm894 = vmor %vm892, %vm893
        %v895 = vsel %vm894, %v887, %v891
        %v896 = vand.u32 2147483647, %v784
        %vm897 = vcmp.eq.f32.partialorder %v896, 8.507059e+37
        %v898 = vand.u32 %v784, 2147483648
        %v899 = vor.u32 1.1754944e-38, %v898
        %v900 = vsel %vm897, %v899, %v895
        %v901 = vrcp.pop %v786
        %v902 = vmul.f32 %v786, %v901
        %v903 = vsub.f32 1.0, %v902
        %v904 = vmul.f32 %v901, %v903
        %v905 = vadd.f32 %v901, %v904
        %vm906 = vweird.f32 %v786
        %vm907 = vweird.f32 %v901
        %vm908 = vmor %vm906, %vm907
        %v909 = vsel %vm908, %v901, %v905
        %v910 = vand.u32 2147483647, %v786
        %vm911 = vcmp.eq.f32.partialorder %v910, 8.507059e+37
        %v912 = vand.u32 %v786, 2147483648
        %v913 = vor.u32 1.1754944e-38, %v912
        %v914 = vsel %vm911, %v913, %v909
        %v915 = vrcp.pop %v788
        %v916 = vmul.f32 %v788, %v915
        %v917 = vsub.f32 1.0, %v916
        %v918 = vmul.f32 %v915, %v917
        %v919 = vadd.f32 %v915, %v918
        %vm920 = vweird.f32 %v788
        %vm921 = vweird.f32 %v915
        %vm922 = vmor %vm920, %vm921
        %v923 = vsel %vm922, %v915, %v919
        %v924 = vand.u32 2147483647, %v788
        %vm925 = vcmp.eq.f32.partialorder %v924, 8.507059e+37
        %v926 = vand.u32 %v788, 2147483648
        %v927 = vor.u32 1.1754944e-38, %v926
        %v928 = vsel %vm925, %v927, %v923
        %v929 = vrcp.pop %v790
        %v930 = vmul.f32 %v790, %v929
        %v931 = vsub.f32 1.0, %v930
        %v932 = vmul.f32 %v929, %v931
        %v933 = vadd.f32 %v929, %v932
        %vm934 = vweird.f32 %v790
        %vm935 = vweird.f32 %v929
        %vm936 = vmor %vm934, %vm935
        %v937 = vsel %vm936, %v929, %v933
        %v938 = vand.u32 2147483647, %v790
        %vm939 = vcmp.eq.f32.partialorder %v938, 8.507059e+37
        %v940 = vand.u32 %v790, 2147483648
        %v941 = vor.u32 1.1754944e-38, %v940
        %v942 = vsel %vm939, %v941, %v937
        %v943 = vrcp.pop %v792
        %v944 = vmul.f32 %v792, %v943
        %v945 = vsub.f32 1.0, %v944
        %v946 = vmul.f32 %v943, %v945
        %v947 = vadd.f32 %v943, %v946
        %vm948 = vweird.f32 %v792
        %vm949 = vweird.f32 %v943
        %vm950 = vmor %vm948, %vm949
        %v951 = vsel %vm950, %v943, %v947
        %v952 = vand.u32 2147483647, %v792
        %vm953 = vcmp.eq.f32.partialorder %v952, 8.507059e+37
        %v954 = vand.u32 %v792, 2147483648
        %v955 = vor.u32 1.1754944e-38, %v954
        %v956 = vsel %vm953, %v955, %v951
        %v957 = vrcp.pop %v794
        %v958 = vmul.f32 %v794, %v957
        %v959 = vsub.f32 1.0, %v958
        %v960 = vmul.f32 %v957, %v959
        %v961 = vadd.f32 %v957, %v960
        %vm962 = vweird.f32 %v794
        %vm963 = vweird.f32 %v957
        %vm964 = vmor %vm962, %vm963
        %v965 = vsel %vm964, %v957, %v961
        %v966 = vand.u32 2147483647, %v794
        %vm967 = vcmp.eq.f32.partialorder %v966, 8.507059e+37
        %v968 = vand.u32 %v794, 2147483648
        %v969 = vor.u32 1.1754944e-38, %v968
        %v970 = vsel %vm967, %v969, %v965
        %v971 = vrcp.pop %v796
        %v972 = vmul.f32 %v796, %v971
        %v973 = vsub.f32 1.0, %v972
        %v974 = vmul.f32 %v971, %v973
        %v975 = vadd.f32 %v971, %v974
        %vm976 = vweird.f32 %v796
        %vm977 = vweird.f32 %v971
        %vm978 = vmor %vm976, %vm977
        %v979 = vsel %vm978, %v971, %v975
        %v980 = vand.u32 2147483647, %v796
        %vm981 = vcmp.eq.f32.partialorder %v980, 8.507059e+37
        %v982 = vand.u32 %v796, 2147483648
        %v983 = vor.u32 1.1754944e-38, %v982
        %v984 = vsel %vm981, %v983, %v979
        %v985 = vrcp.pop %v798
        %v986 = vmul.f32 %v798, %v985
        %v987 = vsub.f32 1.0, %v986
        %v988 = vmul.f32 %v985, %v987
        %v989 = vadd.f32 %v985, %v988
        %vm990 = vweird.f32 %v798
        %vm991 = vweird.f32 %v985
        %vm992 = vmor %vm990, %vm991
        %v993 = vsel %vm992, %v985, %v989
        %v994 = vand.u32 2147483647, %v798
        %vm995 = vcmp.eq.f32.partialorder %v994, 8.507059e+37
        %v996 = vand.u32 %v798, 2147483648
        %v997 = vor.u32 1.1754944e-38, %v996
        %v998 = vsel %vm995, %v997, %v993
        %v999 = vrcp.pop %v800
        %v1000 = vmul.f32 %v800, %v999
        %v1001 = vsub.f32 1.0, %v1000
        %v1002 = vmul.f32 %v999, %v1001
        %v1003 = vadd.f32 %v999, %v1002
        %vm1004 = vweird.f32 %v800
        %vm1005 = vweird.f32 %v999
        %vm1006 = vmor %vm1004, %vm1005
        %v1007 = vsel %vm1006, %v999, %v1003
        %v1008 = vand.u32 2147483647, %v800
        %vm1009 = vcmp.eq.f32.partialorder %v1008, 8.507059e+37
        %v1010 = vand.u32 %v800, 2147483648
        %v1011 = vor.u32 1.1754944e-38, %v1010
        %v1012 = vsel %vm1009, %v1011, %v1007
        %v1013 = vrcp.pop %v802
        %v1014 = vmul.f32 %v802, %v1013
        %v1015 = vsub.f32 1.0, %v1014
        %v1016 = vmul.f32 %v1013, %v1015
        %v1017 = vadd.f32 %v1013, %v1016
        %vm1018 = vweird.f32 %v802
        %vm1019 = vweird.f32 %v1013
        %vm1020 = vmor %vm1018, %vm1019
        %v1021 = vsel %vm1020, %v1013, %v1017
        %v1022 = vand.u32 2147483647, %v802
        %vm1023 = vcmp.eq.f32.partialorder %v1022, 8.507059e+37
        %v1024 = vand.u32 %v802, 2147483648
        %v1025 = vor.u32 1.1754944e-38, %v1024
        %v1026 = vsel %vm1023, %v1025, %v1021
        %v1027 = vmul.f32 %v740, %v816
        %v1028 = vmul.f32 %v742, %v830
        %v1029 = vmul.f32 %v744, %v844
        %v1030 = vmul.f32 %v746, %v858
        %v1031 = vmul.f32 %v748, %v872
        %v1032 = vmul.f32 %v750, %v886
        %v1033 = vmul.f32 %v752, %v900
        %v1034 = vmul.f32 %v754, %v914
        %v1035 = vmul.f32 %v756, %v928
        %v1036 = vmul.f32 %v758, %v942
        %v1037 = vmul.f32 %v760, %v956
        %v1038 = vmul.f32 %v762, %v970
        %v1039 = vmul.f32 %v764, %v984
        %v1040 = vmul.f32 %v766, %v998
        %v1041 = vmul.f32 %v768, %v1012
        %v1042 = vmul.f32 %v770, %v1026
        %1043 = vst [vmem:[%s272] sm:$0xff] %v1027
        %1044 = vst [vmem:[%s272 + $0x8] sm:$0xff] %v1028
        %1045 = vst [vmem:[%s272 + $0x10] sm:$0xff] %v1029
        %1046 = vst [vmem:[%s272 + $0x18] sm:$0xff] %v1030
        %1047 = vst [vmem:[%s272 + $0x20] sm:$0xff] %v1031
        %1048 = vst [vmem:[%s272 + $0x28] sm:$0xff] %v1032
        %1049 = vst [vmem:[%s272 + $0x30] sm:$0xff] %v1033
        %1050 = vst [vmem:[%s272 + $0x38] sm:$0xff] %v1034
        %1051 = vst [vmem:[%s272 + $0x40] sm:$0xff] %v1035
        %1052 = vst [vmem:[%s272 + $0x48] sm:$0xff] %v1036
        %1053 = vst [vmem:[%s272 + $0x50] sm:$0xff] %v1037
        %1054 = vst [vmem:[%s272 + $0x58] sm:$0xff] %v1038
        %1055 = vst [vmem:[%s272 + $0x60] sm:$0xff] %v1039
        %1056 = vst [vmem:[%s272 + $0x68] sm:$0xff] %v1040
        %1057 = vst [vmem:[%s272 + $0x70] sm:$0xff] %v1041
        %1058 = vst [vmem:[%s272 + $0x78] sm:$0xff] %v1042
        %s1059 = sand.u32 %s181, 1
        %s1060 = scalar_lea.sflag [#allocation3], %s1059
        %s1061 = sand.u32 %s181, 1
        %s1062 = smul.addr %s1061, 128
        %s1063 = scalar_lea.vmem [#allocation2], %s1062
        // Predicated region
        $region49: #{tpu_custom_call.1} parent=47 // pred_check
          %p1064 = pneg %p191
        $region50: #{tpu_custom_call.1} parent=47 // pred_check_branch
          %1066 = sbr.rel (%p1064) target = $region52
        $region51: #{tpu_custom_call.1} parent=47 // pred_region
          %s1067 = smul.u32 16, %s21
          %1069 = vsyncadd %s1060, 0
          %s1070 = smul.addr %s1067, 8
          %s1071 = scalar_lea.hbm %s7, %s1070
          %s1072 = sshll.u32 %s1063, 4
          %s1073 = int_to_ptr.vmem [resolvable:$true] %s1072
          %s1074 = sshll.u32 %s1071, 4
          %s1075 = int_to_ptr.hbm [resolvable:$true] %s1074
          %1080 = dma.vmem_to_hbm [thread:$0]  %s1073, 2048, %s1075, %s1060, 128, 128, 8
        $region52: #{tpu_custom_call.1} parent=47 // pred_fallthru
          _
      $region48: #{tpu_custom_call.1} parent=5 // pred_fallthru
        _
      %p1081 = scmp.le.s32.totalorder 2, %s16
      // Predicated region
      $region53: #{tpu_custom_call.1} parent=5 // pred_check
        %p1082 = pneg %p1081
      $region54: #{tpu_custom_call.1} parent=5 // pred_check_branch
        %1084 = sbr.rel (%p1082) target = $region56
      $region55: #{tpu_custom_call.1} parent=5 // pred_region
        %s1085 = ssub.s32 %s16, 2
        // Predicated region
        $region57: #{tpu_custom_call.1} parent=55 // pred_check
          %p1086 = pneg %p197
        $region58: #{tpu_custom_call.1} parent=55 // pred_check_branch
          %1088 = sbr.rel (%p1086) target = $region60
        $region59: #{tpu_custom_call.1} parent=55 // pred_region
          %s1089 = sand.u32 %s182, 1
          %s1090 = scalar_lea.sflag [#allocation3], %s1089
          %s1091 = sand.u32 %s182, 1
          %s1092 = smul.addr %s1091, 128
          %s1093 = scalar_lea.vmem [#allocation2], %s1092
          %1095 = dma.done %s1090, 2048
        $region60: #{tpu_custom_call.1} parent=55 // pred_fallthru
          _
      $region56: #{tpu_custom_call.1} parent=5 // pred_fallthru
        _
    $region6: #{tpu_custom_call.1} parent=1 // loop_footer
      %s20 = sadd.s32 1, %s16
    $region7: #{tpu_custom_call.1} parent=1 // loop_footer_branch
      %15 = sbr.rel target = $region3
    $region8: #{tpu_custom_call.1} parent=1 // loop_exit
      _
    %1096 = vsyncpa [#allocation3], 1
    %s1097 = scalar_lea.sflag [#allocation3], 1
    %1098 = vsyncpa %s1097, 1

</llo_original>
